<compile_context>
chip_gen: v7x
topology: tpu7x:2x2x1
jax: 0.10.0
libtpu: 0.0.40
codegen_flags: <defaults>
</compile_context>

<pallas_src>
import functools

import jax
import jax.numpy as jnp
from jax.experimental import pallas as pl
from jax.experimental.pallas import tpu as pltpu

KSIZE = 3  # module defaults: ksize=3, stride=1, pad=1


def _conv3x3_sigmoid_kernel(x_ref, w_ref, b_ref, o_ref, xpad_ref, *, H, W, Cin, Cout):
    # x_ref   : (1, H, W*Cin)        lane-dense NHWC input slab for one batch element
    # w_ref   : (3, W*Cin, W*Cout)   per-kh tri-diagonal banded weights (conv as matmul;
    #                                kw shift + Cin contraction + W-padding folded in)
    # b_ref   : (1, W*Cout)          bias tiled across W (lane-dense)
    # o_ref   : (1, H, W*Cout)       lane-dense output slab
    # xpad_ref: (H + 2, W*Cin)       VMEM scratch: H-padded input (rows 0 / H+1 are the
    #                                pad=1 zero halo), no lane offset needed.
    WCin = W * Cin

    # In-kernel zero halo along H (pad=1): write just the two halo rows, then copy the
    # input slab at lane offset 0 (no lane shift / relayout).  Re-done every grid step
    # (trivially cheap) so the "parallel" axis carries no cross-iteration state.
    zero_row = jnp.zeros((1, WCin), dtype=xpad_ref.dtype)
    xpad_ref[0:1, :] = zero_row
    xpad_ref[H + 1:H + 2, :] = zero_row
    xpad_ref[1:H + 1, :] = x_ref[0]

    # Lane-dense f32 accumulator (H, W*Cout) initialised from the bias
    # (folds the bias add into the init -> no separate VPU pass).
    acc = jnp.broadcast_to(b_ref[...], (H, W * Cout)).astype(jnp.float32)

    # 3x3 conv as 3 MXU matmuls with K = W*Cin; the result is already lane-dense.
    for kh in range(KSIZE):
        acc = acc + jnp.dot(
            xpad_ref[kh:kh + H, :],
            w_ref[kh],
            preferred_element_type=jnp.float32,
        )

    # sigmoid(x) == 0.5*tanh(0.5*x) + 0.5  -> single EUP transcendental.
    o_ref[0] = (0.5 * jnp.tanh(0.5 * acc) + 0.5).astype(o_ref.dtype)


def _banded_weights(weight, W):
    """(Cout, Cin, 3, 3) -> (3, W*Cin, W*Cout) tri-diagonal block-banded matrices.

    Wband[kh][q*Cin + cin, j*Cout + cout] = weight[cout, cin, kh, kw]  with q = j + kw - 1
    restricted to 0 <= q < W (out-of-range taps hit the pad=1 zeros, so they are simply
    absent).  Thus  x_row(W*Cin) @ Wband[kh]  yields the lane-dense (W*Cout,) output-row
    contribution of kernel row kh, with padding along W already accounted for.
    """
    Cout, Cin, KH, KW = weight.shape
    w_taps = jnp.transpose(weight, (2, 3, 1, 0))          # (KH, KW, Cin, Cout)
    bands = []
    for kh in range(KH):
        t = jnp.zeros((W, Cin, W, Cout), weight.dtype)
        for kw in range(KW):
            # sel[q, j] = 1 iff q == j + kw - 1  (valid indices only).
            sel = jnp.eye(W, W, k=1 - kw, dtype=weight.dtype)
            t = t + jnp.einsum("qj,cd->qcjd", sel, w_taps[kh, kw])
        bands.append(t.reshape(W * Cin, W * Cout))
    return jnp.stack(bands, axis=0)


def basic_block_sig(x_nchw, weight, bias):
    """Forward of BasicBlockSig.

    x_nchw: (N, Cin, H, W) float32
    weight: (Cout, Cin, 3, 3) float32   (PyTorch Conv2d layout)
    bias:   (Cout,) float32
    returns (N, Cout, H, W) float32
    """
    N, Cin, H, W = x_nchw.shape
    Cout = weight.shape[0]

    # TODO(synk): if the surrounding model keeps activations in NHWC, these two boundary
    # transposes (the only remaining wrapper HBM passes) disappear entirely.
    x_ld = jnp.transpose(x_nchw, (0, 2, 3, 1)).reshape(N, H, W * Cin)   # lane-dense NHWC
    w_band = _banded_weights(weight, W)                                 # (3, W*Cin, W*Cout)
    b_ld = jnp.tile(bias, W).reshape(1, W * Cout)                       # lane-dense bias

    kernel = functools.partial(_conv3x3_sigmoid_kernel, H=H, W=W, Cin=Cin, Cout=Cout)

    # NOTE: for production-size H/W, add an H-tile grid axis (with halo rows) so blocks
    # fit v7x's 64 MiB VMEM and both TensorCores stay fed even at small batch.
    out_ld = pl.pallas_call(
        kernel,
        out_shape=jax.ShapeDtypeStruct((N, H, W * Cout), x_nchw.dtype),
        grid_spec=pltpu.PrefetchScalarGridSpec(
            num_scalar_prefetch=0,
            grid=(N,),
            in_specs=[
                pl.BlockSpec((1, H, W * Cin), lambda n: (n, 0, 0)),
                pl.BlockSpec((KSIZE, W * Cin, W * Cout), lambda n: (0, 0, 0)),
                pl.BlockSpec((1, W * Cout), lambda n: (0, 0)),
            ],
            out_specs=pl.BlockSpec((1, H, W * Cout), lambda n: (n, 0, 0)),
            scratch_shapes=[pltpu.VMEM((H + 2, W * Cin), x_nchw.dtype)],
        ),
        compiler_params=pltpu.CompilerParams(
            dimension_semantics=("parallel",)),
    )(x_ld, w_band, b_ld)

    out_nhwc = out_ld.reshape(N, H, W, Cout)
    return jnp.transpose(out_nhwc, (0, 3, 1, 2))                        # back to NCHW


if __name__ == "__main__":
    key = jax.random.PRNGKey(0)
    k_x, k_w, k_b = jax.random.split(key, 3)

    N, Cin, Cout, H, W = 2, 4, 8, 16, 16
    x = jax.random.normal(k_x, (N, Cin, H, W), dtype=jnp.float32)
    # Deterministic synthetic params (PyTorch Conv2d weight shape (Cout, Cin, 3, 3)).
    fan_in = Cin * KSIZE * KSIZE
    bound = 1.0 / (fan_in ** 0.5)
    weight = jax.random.uniform(k_w, (Cout, Cin, KSIZE, KSIZE),
                                minval=-bound, maxval=bound, dtype=jnp.float32)
    bias = jax.random.uniform(k_b, (Cout,), minval=-bound, maxval=bound,
                              dtype=jnp.float32)

    out = basic_block_sig(x, weight, bias)
    jax.block_until_ready(out)

    # Lightweight correctness check against the XLA conv reference.
    ref = jax.lax.conv_general_dilated(
        x, weight, window_strides=(1, 1), padding=((1, 1), (1, 1)),
        dimension_numbers=("NCHW", "OIHW", "NCHW"))
    ref = jax.nn.sigmoid(ref + bias[None, :, None, None])
    assert out.shape == (N, Cout, H, W)
    assert jnp.allclose(out, ref, atol=1e-5, rtol=1e-5)

    print("KERNEL_OK")
</pallas_src>

<mosaic_0001>
module attributes {stable_mosaic.version = 11 : i64} {
  func.func @_conv3x3_sigmoid_kernel(%arg0: i32, %arg1: memref<1x16x64xf32, #tpu.memory_space<vmem>>, %arg2: memref<3x64x128xf32, #tpu.memory_space<vmem>>, %arg3: memref<1x128xf32, #tpu.memory_space<vmem>>, %arg4: memref<1x16x128xf32, #tpu.memory_space<vmem>>, %arg5: memref<18x64xf32, #tpu.memory_space<vmem>>) attributes {dimension_semantics = [#tpu.dimension_semantics<parallel>], iteration_bounds = array<i64: 2>, scalar_prefetch = 0 : i64, scratch_operands = 1 : i64, tpu.core_type = #tpu.core_type<tc>, window_params = [{transform_indices = @transform_0, window_bounds = array<i64: 1, 16, 64>}, {pipeline_mode = #tpu.pipeline_mode<synchronous>, transform_indices = @transform_1, window_bounds = array<i64: 3, 64, 128>}, {pipeline_mode = #tpu.pipeline_mode<synchronous>, transform_indices = @transform_2, window_bounds = array<i64: 1, 128>}, {transform_indices = @transform_3, window_bounds = array<i64: 1, 16, 128>}]} {
    %cst = arith.constant 0.000000e+00 : f32
    %0 = vector.broadcast %cst : f32 to vector<1x64xf32>
    %c0 = arith.constant 0 : index
    %c0_0 = arith.constant 0 : index
    %1 = vector.load %arg5[%c0, %c0_0] : memref<18x64xf32, #tpu.memory_space<vmem>>, vector<1x64xf32>
    tpu.vector_store %arg5[%c0, %c0_0], %0 {strides = array<i32>} : memref<18x64xf32, #tpu.memory_space<vmem>>, vector<1x64xf32>,
    %c17 = arith.constant 17 : index
    %c0_1 = arith.constant 0 : index
    %2 = vector.load %arg5[%c17, %c0_1] : memref<18x64xf32, #tpu.memory_space<vmem>>, vector<1x64xf32>
    tpu.vector_store %arg5[%c17, %c0_1], %0 {strides = array<i32>} : memref<18x64xf32, #tpu.memory_space<vmem>>, vector<1x64xf32>,
    %c0_2 = arith.constant 0 : index
    %c0_3 = arith.constant 0 : index
    %c0_4 = arith.constant 0 : index
    %3 = vector.load %arg1[%c0_2, %c0_3, %c0_4] : memref<1x16x64xf32, #tpu.memory_space<vmem>>, vector<1x16x64xf32>
    %4 = vector.shape_cast %3 : vector<1x16x64xf32> to vector<16x64xf32>
    %c1 = arith.constant 1 : index
    %c0_5 = arith.constant 0 : index
    %5 = vector.load %arg5[%c1, %c0_5] : memref<18x64xf32, #tpu.memory_space<vmem>>, vector<16x64xf32>
    tpu.vector_store %arg5[%c1, %c0_5], %4 {strides = array<i32>} : memref<18x64xf32, #tpu.memory_space<vmem>>, vector<16x64xf32>,
    %c0_6 = arith.constant 0 : index
    %c0_7 = arith.constant 0 : index
    %6 = vector.load %arg3[%c0_6, %c0_7] : memref<1x128xf32, #tpu.memory_space<vmem>>, vector<1x128xf32>
    %7 = vector.shape_cast %6 : vector<1x128xf32> to vector<1x128xf32>
    %8 = vector.broadcast %7 : vector<1x128xf32> to vector<16x128xf32>
    %c0_8 = arith.constant 0 : index
    %c0_9 = arith.constant 0 : index
    %9 = vector.load %arg5[%c0_8, %c0_9] : memref<18x64xf32, #tpu.memory_space<vmem>>, vector<16x64xf32>
    %c0_10 = arith.constant 0 : index
    %c0_11 = arith.constant 0 : index
    %c0_12 = arith.constant 0 : index
    %10 = vector.load %arg2[%c0_10, %c0_11, %c0_12] : memref<3x64x128xf32, #tpu.memory_space<vmem>>, vector<1x64x128xf32>
    %11 = vector.shape_cast %10 : vector<1x64x128xf32> to vector<64x128xf32>
    %cst_13 = arith.constant dense<0.000000e+00> : vector<16x128xf32>
    %12 = tpu.matmul %9, %11, %cst_13 {dimension_numbers = #tpu.dot_dimension_numbers<[1], [0], [0], [1], [0, 0, 1, 1], [], []>} : vector<16x64xf32>, vector<64x128xf32>, vector<16x128xf32> -> vector<16x128xf32>
    %13 = arith.addf %8, %12 : vector<16x128xf32>
    %c1_14 = arith.constant 1 : index
    %c0_15 = arith.constant 0 : index
    %14 = vector.load %arg5[%c1_14, %c0_15] : memref<18x64xf32, #tpu.memory_space<vmem>>, vector<16x64xf32>
    %c1_16 = arith.constant 1 : index
    %c0_17 = arith.constant 0 : index
    %c0_18 = arith.constant 0 : index
    %15 = vector.load %arg2[%c1_16, %c0_17, %c0_18] : memref<3x64x128xf32, #tpu.memory_space<vmem>>, vector<1x64x128xf32>
    %16 = vector.shape_cast %15 : vector<1x64x128xf32> to vector<64x128xf32>
    %cst_19 = arith.constant dense<0.000000e+00> : vector<16x128xf32>
    %17 = tpu.matmul %14, %16, %cst_19 {dimension_numbers = #tpu.dot_dimension_numbers<[1], [0], [0], [1], [0, 0, 1, 1], [], []>} : vector<16x64xf32>, vector<64x128xf32>, vector<16x128xf32> -> vector<16x128xf32>
    %18 = arith.addf %13, %17 : vector<16x128xf32>
    %c2 = arith.constant 2 : index
    %c0_20 = arith.constant 0 : index
    %19 = vector.load %arg5[%c2, %c0_20] : memref<18x64xf32, #tpu.memory_space<vmem>>, vector<16x64xf32>
    %c2_21 = arith.constant 2 : index
    %c0_22 = arith.constant 0 : index
    %c0_23 = arith.constant 0 : index
    %20 = vector.load %arg2[%c2_21, %c0_22, %c0_23] : memref<3x64x128xf32, #tpu.memory_space<vmem>>, vector<1x64x128xf32>
    %21 = vector.shape_cast %20 : vector<1x64x128xf32> to vector<64x128xf32>
    %cst_24 = arith.constant dense<0.000000e+00> : vector<16x128xf32>
    %22 = tpu.matmul %19, %21, %cst_24 {dimension_numbers = #tpu.dot_dimension_numbers<[1], [0], [0], [1], [0, 0, 1, 1], [], []>} : vector<16x64xf32>, vector<64x128xf32>, vector<16x128xf32> -> vector<16x128xf32>
    %23 = arith.addf %18, %22 : vector<16x128xf32>
    %cst_25 = arith.constant 5.000000e-01 : f32
    %24 = vector.broadcast %cst_25 : f32 to vector<16x128xf32>
    %25 = arith.mulf %24, %23 : vector<16x128xf32>
    %26 = math.tanh %25 : vector<16x128xf32>
    %cst_26 = arith.constant 5.000000e-01 : f32
    %27 = vector.broadcast %cst_26 : f32 to vector<16x128xf32>
    %28 = arith.mulf %27, %26 : vector<16x128xf32>
    %cst_27 = arith.constant 5.000000e-01 : f32
    %29 = vector.broadcast %cst_27 : f32 to vector<16x128xf32>
    %30 = arith.addf %28, %29 : vector<16x128xf32>
    %c0_28 = arith.constant 0 : index
    %c0_29 = arith.constant 0 : index
    %c0_30 = arith.constant 0 : index
    %31 = vector.load %arg4[%c0_28, %c0_29, %c0_30] : memref<1x16x128xf32, #tpu.memory_space<vmem>>, vector<1x16x128xf32>
    %32 = vector.shape_cast %31 : vector<1x16x128xf32> to vector<16x128xf32>
    %33 = vector.shape_cast %30 : vector<16x128xf32> to vector<1x16x128xf32>
    tpu.vector_store %arg4[%c0_28, %c0_29, %c0_30], %33 {strides = array<i32>} : memref<1x16x128xf32, #tpu.memory_space<vmem>>, vector<1x16x128xf32>,
    return
  }
  func.func @transform_0(%arg0: i32) -> (i32, i32, i32) {
    %c0_i32 = arith.constant 0 : i32
    %c0_i32_0 = arith.constant 0 : i32
    %c0_i32_1 = arith.constant 0 : i32
    return %arg0, %c0_i32, %c0_i32_0 : i32, i32, i32
  }
  func.func @transform_1(%arg0: i32) -> (i32, i32, i32) {
    %c0_i32 = arith.constant 0 : i32
    %c0_i32_0 = arith.constant 0 : i32
    %c0_i32_1 = arith.constant 0 : i32
    %c0_i32_2 = arith.constant 0 : i32
    return %c0_i32, %c0_i32_0, %c0_i32_1 : i32, i32, i32
  }
  func.func @transform_2(%arg0: i32) -> (i32, i32) {
    %c0_i32 = arith.constant 0 : i32
    %c0_i32_0 = arith.constant 0 : i32
    %c0_i32_1 = arith.constant 0 : i32
    return %c0_i32, %c0_i32_0 : i32, i32
  }
  func.func @transform_3(%arg0: i32) -> (i32, i32, i32) {
    %c0_i32 = arith.constant 0 : i32
    %c0_i32_0 = arith.constant 0 : i32
    %c0_i32_1 = arith.constant 0 : i32
    return %arg0, %c0_i32, %c0_i32_0 : i32, i32, i32
  }
}

</mosaic_0001>

<llo_original>
// kernel: tpu_custom_call.1
$region0: #{tpu_custom_call.1}
  #allocation0 [shape = 'u32[]', space=smem, size = 0x4, offset = 0x4, fixed_abs, tag = 'smem constant byte address 0x4 - core index']
  #allocation1 [shape = 'u32[144,128]{1,0:T(1,128)}', space=vmem, size = 0x12000, scoped, tag = 'internal scratch']
  #allocation2 [shape = 'f32[18,64]{1,0:T(8,128)}', space=vmem, size = 0x3000, scoped, tag = 'scratch operand']
  %s0 = inlined_call_operand.hbm [shape: f32[2,16,64], index: 0, kind: input, shape index: {}]
  %s1 = inlined_call_operand.hbm [shape: f32[3,64,128], index: 1, kind: input, shape index: {}]
  %s2 = inlined_call_operand.vmem [shape: f32[1,128], index: 2, kind: input, shape index: {}]
  %s3 = inlined_call_operand.hbm [shape: f32[2,16,128], index: 3, kind: output, shape index: {}]
  %s4 = sld [smem:[#allocation0]]
  $region53: #{tpu_custom_call.1} parent=0
    _
  %s6 = ssub.s32 1, %s4
  %s7 = scalar_select 0, %s6, %s4
  $region1: #{tpu_custom_call.1} parent=0
    #allocation3 [shape = 'u8[16384]{0}', space=vmem, size = 0x4000, scoped, tag = 'input window, operand 0']
    #allocation4 [shape = 's32[2]{0}', space=sflag, size = 0x8, scoped, tag = 'scoped memory for tpu_custom_call.1']
    #allocation5 [shape = 's32[2]{0}', space=sflag, size = 0x8, scoped, tag = 'scoped memory for tpu_custom_call.1']
    #allocation6 [shape = 'u8[98304]{0}', space=vmem, size = 0x18000, scoped, tag = 'input window, operand 1, single buffered']
    #allocation7 [shape = 's32[1]{0}', space=sflag, size = 0x4, scoped, tag = 'scoped memory for tpu_custom_call.1']
    #allocation8 [shape = 'u8[16384]{0}', space=vmem, size = 0x4000, scoped, tag = 'output window, operand 0']
    %8 = vsyncpa [#allocation4], 0
    %s9 = scalar_lea.sflag [#allocation4], 1
    %10 = vsyncpa %s9, 0
    %11 = vsyncpa [#allocation7], 0
    %12 = vsyncpa [#allocation5], 0
    %s13 = scalar_lea.sflag [#allocation5], 1
    %14 = vsyncpa %s13, 0
    loop: start=0, step=1, limit=4
    $region2: #{tpu_custom_call.1} parent=1 // loop_pre_header
      _
    $region3: #{tpu_custom_call.1} parent=1 // loop_header
      %s16 = sphi 0, %s20
      %p17 = scmp.ge.s32.totalorder %s16, 4
      %s26 = sphi 0, %s28
      %s29 = sphi 0, %s26
      %s30 = sphi 0, %s29
      %s46 = sphi 0, %s30
      %s50 = sphi 0, %s50
      %s52 = sphi 0, %s50
      %s53 = sphi 0, %s52
      %s67 = sphi 0, %s53
      %s71 = sphi 0, %s71
      %s73 = sphi 0, %s71
      %s74 = sphi 0, %s73
      %s88 = sphi 0, %s74
      %s94 = sphi 0, %s96
      %s97 = sphi 0, %s94
      %s98 = sphi 0, %s97
      %s114 = sphi 0, %s98
    $region4: #{tpu_custom_call.1} parent=1 // loop_header_branch
      %19 = sbr.rel (%p17) target = $region8
    $region5: #{tpu_custom_call.1} parent=1 // loop_body
      %s21 = ssub.s32 %s16, 1
      %s22 = ssub.s32 %s16, 2
      %s23 = sadd.s32 %s16, 1
      %s24 = ssub.s32 %s16, %s23
      %p25 = scmp.eq.s32.totalorder %s24, 0
      %s27 = sadd.s32 %s26, 1
      %s28 = scalar_select %p25, %s26, %s27
      %p31 = pneg %p25
      %p32 = scmp.eq.s32.totalorder %s16, 1
      %p33 = por %p31, %p32
      %p34 = scmp.ne.s32.totalorder %s26, %s29
      %p35 = scmp.eq.s32.totalorder %s16, 0
      %p36 = por %p34, %p35
      %p37 = scmp.ne.s32.totalorder %s26, %s29
      %p38 = scmp.eq.s32.totalorder %s21, 1
      %p39 = por %p37, %p38
      %p40 = scmp.ne.s32.totalorder %s29, %s30
      %p41 = scmp.eq.s32.totalorder %s21, 0
      %p42 = por %p40, %p41
      %p43 = scmp.ne.s32.totalorder %s29, %s30
      %p44 = scmp.eq.s32.totalorder %s22, 1
      %p45 = por %p43, %p44
      %p47 = scmp.ne.s32.totalorder %s30, %s46
      %p48 = scmp.eq.s32.totalorder %s22, 0
      %p49 = por %p47, %p48
      %s51 = sadd.s32 %s50, 1
      %p54 = scmp.eq.s32.totalorder %s16, 1
      %p55 = scmp.ne.s32.totalorder %s50, %s52
      %p56 = scmp.eq.s32.totalorder %s16, 0
      %p57 = por %p55, %p56
      %p58 = scmp.ne.s32.totalorder %s50, %s52
      %p59 = scmp.eq.s32.totalorder %s21, 1
      %p60 = por %p58, %p59
      %p61 = scmp.ne.s32.totalorder %s52, %s53
      %p62 = scmp.eq.s32.totalorder %s21, 0
      %p63 = por %p61, %p62
      %p64 = scmp.ne.s32.totalorder %s52, %s53
      %p65 = scmp.eq.s32.totalorder %s22, 1
      %p66 = por %p64, %p65
      %p68 = scmp.ne.s32.totalorder %s53, %s67
      %p69 = scmp.eq.s32.totalorder %s22, 0
      %p70 = por %p68, %p69
      %s72 = sadd.s32 %s71, 1
      %p75 = scmp.eq.s32.totalorder %s16, 1
      %p76 = scmp.ne.s32.totalorder %s71, %s73
      %p77 = scmp.eq.s32.totalorder %s16, 0
      %p78 = por %p76, %p77
      %p79 = scmp.ne.s32.totalorder %s71, %s73
      %p80 = scmp.eq.s32.totalorder %s21, 1
      %p81 = por %p79, %p80
      %p82 = scmp.ne.s32.totalorder %s73, %s74
      %p83 = scmp.eq.s32.totalorder %s21, 0
      %p84 = por %p82, %p83
      %p85 = scmp.ne.s32.totalorder %s73, %s74
      %p86 = scmp.eq.s32.totalorder %s22, 1
      %p87 = por %p85, %p86
      %p89 = scmp.ne.s32.totalorder %s74, %s88
      %p90 = scmp.eq.s32.totalorder %s22, 0
      %p91 = por %p89, %p90
      %s92 = ssub.s32 %s16, %s23
      %p93 = scmp.eq.s32.totalorder %s92, 0
      %s95 = sadd.s32 %s94, 1
      %s96 = scalar_select %p93, %s94, %s95
      %p99 = pneg %p93
      %p100 = scmp.eq.s32.totalorder %s16, 1
      %p101 = por %p99, %p100
      %p102 = scmp.ne.s32.totalorder %s94, %s97
      %p103 = scmp.eq.s32.totalorder %s16, 0
      %p104 = por %p102, %p103
      %p105 = scmp.ne.s32.totalorder %s94, %s97
      %p106 = scmp.eq.s32.totalorder %s21, 1
      %p107 = por %p105, %p106
      %p108 = scmp.ne.s32.totalorder %s97, %s98
      %p109 = scmp.eq.s32.totalorder %s21, 0
      %p110 = por %p108, %p109
      %p111 = scmp.ne.s32.totalorder %s97, %s98
      %p112 = scmp.eq.s32.totalorder %s22, 1
      %p113 = por %p111, %p112
      %p115 = scmp.ne.s32.totalorder %s98, %s114
      %p116 = scmp.eq.s32.totalorder %s22, 0
      %p117 = por %p115, %p116
      %p118 = scmp.le.s32.totalorder 1, %s16
      %p119 = scmp.lt.s32.totalorder %s16, 3
      %p120 = pnand %p118, %p119
      %p121 = pneg %p120
      // Predicated region
      $region9: #{tpu_custom_call.1} parent=5 // pred_check
        _
      $region10: #{tpu_custom_call.1} parent=5 // pred_check_branch
        %123 = sbr.rel (%p120) target = $region12
      $region11: #{tpu_custom_call.1} parent=5 // pred_region
        %s124 = ssub.s32 %s16, 1
        // Predicated region
        $region13: #{tpu_custom_call.1} parent=11 // pred_check
          %p125 = pneg %p63
        $region14: #{tpu_custom_call.1} parent=11 // pred_check_branch
          %127 = sbr.rel (%p125) target = $region16
        $region15: #{tpu_custom_call.1} parent=11 // pred_region
          %s129 = ssub.s32 3072, 3072
          %130 = vsyncadd [#allocation7], %s129
          %s131 = sshll.u32 [#allocation6], 4
          %s132 = int_to_ptr.vmem [resolvable:$true] %s131
          %137 = dma.hbm_to_vmem [thread:$0]  %s1, 3072, %s132, [#allocation7], 128, 128, 8
        $region16: #{tpu_custom_call.1} parent=11 // pred_fallthru
          _
        // Predicated region
        $region17: #{tpu_custom_call.1} parent=11 // pred_check
          %p138 = pneg %p84
        $region18: #{tpu_custom_call.1} parent=11 // pred_check_branch
          %140 = sbr.rel (%p138) target = $region20
        $region19: #{tpu_custom_call.1} parent=11 // pred_region
          _
        $region20: #{tpu_custom_call.1} parent=11 // pred_fallthru
          _
      $region12: #{tpu_custom_call.1} parent=5 // pred_fallthru
        _
      %p141 = scmp.lt.s32.totalorder %s16, 2
      // Predicated region
      $region21: #{tpu_custom_call.1} parent=5 // pred_check
        %p142 = pneg %p141
      $region22: #{tpu_custom_call.1} parent=5 // pred_check_branch
        %144 = sbr.rel (%p142) target = $region24
      $region23: #{tpu_custom_call.1} parent=5 // pred_region
        // Predicated region
        $region25: #{tpu_custom_call.1} parent=23 // pred_check
          %p145 = pneg %p36
        $region26: #{tpu_custom_call.1} parent=23 // pred_check_branch
          %147 = sbr.rel (%p145) target = $region28
        $region27: #{tpu_custom_call.1} parent=23 // pred_region
          %s148 = sand.u32 %s26, 1
          %s149 = scalar_lea.sflag [#allocation4], %s148
          %s150 = sand.u32 %s26, 1
          %s151 = smul.addr %s150, 16
          %s152 = scalar_lea.vmem [#allocation3], %s151
          %s154 = ssub.s32 256, 256
          %155 = vsyncadd %s149, %s154
          %s156 = smul.addr %s16, 2
          %s157 = smul.addr %s156, 128
          %s158 = scalar_lea.hbm %s0, %s157
          %s159 = sshll.u32 %s152, 4
          %s160 = int_to_ptr.vmem [resolvable:$true] %s159
          %165 = dma.hbm_to_vmem [thread:$0]  %s158, 256, %s160, %s149, 128, 128, 8
        $region28: #{tpu_custom_call.1} parent=23 // pred_fallthru
          _
      $region24: #{tpu_custom_call.1} parent=5 // pred_fallthru
        _
      %p166 = scmp.le.s32.totalorder 1, %s16
      %p167 = scmp.lt.s32.totalorder %s16, 3
      %p168 = pnand %p166, %p167
      %p169 = pneg %p168
      // Predicated region
      $region29: #{tpu_custom_call.1} parent=5 // pred_check
        _
      $region30: #{tpu_custom_call.1} parent=5 // pred_check_branch
        %171 = sbr.rel (%p168) target = $region32
      $region31: #{tpu_custom_call.1} parent=5 // pred_region
        %s172 = ssub.s32 %s16, 1
        %s173 = sand.u32 %s29, 1
        %s174 = scalar_lea.sflag [#allocation4], %s173
        %s175 = sand.u32 %s29, 1
        %s176 = smul.addr %s175, 16
        %s177 = scalar_lea.vmem [#allocation3], %s176
        // Predicated region
        $region33: #{tpu_custom_call.1} parent=31 // pred_check
          %p178 = pneg %p42
        $region34: #{tpu_custom_call.1} parent=31 // pred_check_branch
          %180 = sbr.rel (%p178) target = $region36
        $region35: #{tpu_custom_call.1} parent=31 // pred_region
          %181 = dma.done %s174, 256
        $region36: #{tpu_custom_call.1} parent=31 // pred_fallthru
          _
        // Predicated region
        $region37: #{tpu_custom_call.1} parent=31 // pred_check
          %p182 = pneg %p63
        $region38: #{tpu_custom_call.1} parent=31 // pred_check_branch
          %184 = sbr.rel (%p182) target = $region40
        $region39: #{tpu_custom_call.1} parent=31 // pred_region
          %185 = dma.done [#allocation7], 3072
        $region40: #{tpu_custom_call.1} parent=31 // pred_fallthru
          _
        %s186 = sand.u32 %s29, 1
        %s187 = scalar_lea.sflag [#allocation4], %s186
        %s188 = sand.u32 %s29, 1
        %s189 = smul.addr %s188, 16
        %s190 = scalar_lea.vmem [#allocation3], %s189
        %p191 = pneg %p42
        %p192 = pneg %p39
        %p193 = pneg %p63
        %p194 = pneg %p60
        %p195 = pneg %p84
        %p196 = pneg %p81
        %p197 = pneg %p110
        %p198 = pneg %p107
        %s199 = sand.u32 %s97, 1
        %s200 = scalar_lea.sflag [#allocation5], %s199
        %s201 = sand.u32 %s97, 1
        %s202 = smul.addr %s201, 16
        %s203 = scalar_lea.vmem [#allocation8], %s202
        %vm204 = vcmask 516096
        %205 = vst.msk [vmem:[#allocation2] sm:$0x1] %vm204, 0.0
        %206 = vst.msk [vmem:[#allocation2 + $0x11] sm:$0x1] %vm204, 0.0
        %v207 = vld [vmem:[%s177] sm:$0xff]
        %v208 = vld [vmem:[%s177 + $0x8] sm:$0xff]
        %vm209 = vcmask 523264
        %210 = vst.msk [vmem:[#allocation2 + $0x1] sm:$0xff] %vm209, %v207
        %211 = vst.msk [vmem:[#allocation2 + $0x9] sm:$0xff] %vm209, %v208
        %v212 = vld [vmem:[%s2] sm:$0x1]
        %v214 = vlaneseq
        %v215 = vshrl.u32 %v214, 7
        %v216 = vsub.s32 0, %v215
        %v217 = vrot.slane %v212, %v216
        %v219 = vld [vmem:[#allocation2] sm:$0xff]
        %v220 = vld [vmem:[#allocation2 + $0x8] sm:$0xff]
        %v221 = vld [vmem:[#allocation6] sm:$0xff]
        %v222 = vld [vmem:[#allocation6 + $0x8] sm:$0xff]
        %v223 = vld [vmem:[#allocation6 + $0x10] sm:$0xff]
        %v224 = vld [vmem:[#allocation6 + $0x18] sm:$0xff]
        %v225 = vld [vmem:[#allocation6 + $0x20] sm:$0xff]
        %v226 = vld [vmem:[#allocation6 + $0x28] sm:$0xff]
        %v227 = vld [vmem:[#allocation6 + $0x30] sm:$0xff]
        %v228 = vld [vmem:[#allocation6 + $0x38] sm:$0xff]
        %v230 = vsel %vm209, %v219, 0
        %v233 = vsel %vm209, %v220, 0
        %235 = vmatprep.subr.mxu0 0.0
        %236 = vmatpush1.msra.mxu0 %v221
        %237 = vmatprep.subr.mxu0 0.0
        %238 = vmatpush1.msra.mxu0 %v222
        %239 = vmatprep.subr.mxu0 0.0
        %240 = vmatpush1.msra.mxu0 %v223
        %241 = vmatprep.subr.mxu0 0.0
        %242 = vmatpush1.msra.mxu0 %v224
        %243 = vmatprep.subr.mxu0 0.0
        %244 = vmatpush1.msra.mxu0 %v225
        %245 = vmatprep.subr.mxu0 0.0
        %246 = vmatpush1.msra.mxu0 %v226
        %247 = vmatprep.subr.mxu0 0.0
        %248 = vmatpush1.msra.mxu0 %v227
        %249 = vmatprep.subr.mxu0 0.0
        %250 = vmatpush1.msra.mxu0 %v228
        %251 = vmatprep.subr.mxu0 0.0
        %252 = vmatpush1.msra.mxu0 0.0
        %253 = vmatprep.subr.mxu0 0.0
        %254 = vmatpush1.msra.mxu0 0.0
        %255 = vmatprep.subr.mxu0 0.0
        %256 = vmatpush1.msra.mxu0 0.0
        %257 = vmatprep.subr.mxu0 0.0
        %258 = vmatpush1.msra.mxu0 0.0
        %259 = vmatprep.subr.mxu0 0.0
        %260 = vmatpush1.msra.mxu0 0.0
        %261 = vmatprep.subr.mxu0 0.0
        %262 = vmatpush1.msra.mxu0 0.0
        %263 = vmatprep.subr.mxu0 0.0
        %264 = vmatpush1.msra.mxu0 0.0
        %265 = vmatprep.subr.mxu0 0.0
        %266 = vmatpush1.msra.mxu0 0.0
        %267 = vmatprep.subr.mxu0 0.0
        %268 = vmatpush1.msra.mxu0 0.0
        %269 = vmatprep.subr.mxu0 0.0
        %270 = vmatpush1.msra.mxu0 0.0
        %271 = vmatprep.subr.mxu0 0.0
        %272 = vmatpush1.msra.mxu0 0.0
        %273 = vmatprep.subr.mxu0 0.0
        %274 = vmatpush1.msra.mxu0 0.0
        %275 = vmatprep.subr.mxu0 0.0
        %276 = vmatpush1.msra.mxu0 0.0
        %277 = vmatprep.subr.mxu0 0.0
        %278 = vmatpush1.msra.mxu0 0.0
        %279 = vmatprep.subr.mxu0 0.0
        %280 = vmatpush1.msra.mxu0 0.0
        %281 = vmatprep.subr.mxu0 0.0
        %282 = vmatpush1.msra.mxu0 0.0
        %283 = vmatprep.subr.mxu0 0.0
        %284 = vmatpush1.msra.mxu0 0.0
        %285 = vmatprep.subr.mxu0 0.0
        %286 = vmatpush1.msra.mxu0 0.0
        %287 = vmatprep.subr.mxu0 0.0
        %288 = vmatpush1.msra.mxu0 0.0
        %289 = vmatprep.subr.mxu0 0.0
        %290 = vmatpush1.msra.mxu0 0.0
        %291 = vmatprep.subr.mxu0 0.0
        %292 = vmatpush1.msra.mxu0 0.0
        %293 = vmatprep.subr.mxu0 0.0
        %294 = vmatpush1.msra.mxu0 0.0
        %295 = vmatprep.subr.mxu0 0.0
        %296 = vmatpush1.msra.mxu0 0.0
        %297 = vmatprep.subr.mxu0 0.0
        %298 = vmatpush1.msra.mxu0 0.0
        %299 = vmatprep.mubr.f32.mxu0 0.0
        %300 = vmatmul.mubr.f32.gmra.mrb[0].mxu0 %v230
        %v301 = vpop.f32.mrb[0].mxu0
        %v302 = vadd.f32 0.0, %v301
        %v303 = vpop.f32.mrb[0].mxu0
        %304 = vmatprep.mubr.f32.mxu0 0.0
        %305 = vmatmul.mubr.f32.gmra.mrb[0].mxu0 %v233
        %v306 = vpop.f32.mrb[0].mxu0
        %v307 = vadd.f32 0.0, %v306
        %v308 = vpop.f32.mrb[0].mxu0
        %309 = vdwg.mxu0
        %v310 = vadd.f32 %v217, %v302
        %v311 = vadd.f32 %v217, %v307
        %v312 = vld [vmem:[#allocation2 + $0x1] sm:$0xff]
        %v313 = vld [vmem:[#allocation2 + $0x9] sm:$0xff]
        %s314 = scalar_lea.vmem [#allocation6], 64
        %v315 = vld [vmem:[%s314] sm:$0xff]
        %v316 = vld [vmem:[%s314 + $0x8] sm:$0xff]
        %v317 = vld [vmem:[%s314 + $0x10] sm:$0xff]
        %v318 = vld [vmem:[%s314 + $0x18] sm:$0xff]
        %v319 = vld [vmem:[%s314 + $0x20] sm:$0xff]
        %v320 = vld [vmem:[%s314 + $0x28] sm:$0xff]
        %v321 = vld [vmem:[%s314 + $0x30] sm:$0xff]
        %v322 = vld [vmem:[%s314 + $0x38] sm:$0xff]
        %v324 = vsel %vm209, %v312, 0
        %v327 = vsel %vm209, %v313, 0
        %329 = vmatprep.subr.mxu0 0.0
        %330 = vmatpush1.msra.mxu0 %v315
        %331 = vmatprep.subr.mxu0 0.0
        %332 = vmatpush1.msra.mxu0 %v316
        %333 = vmatprep.subr.mxu0 0.0
        %334 = vmatpush1.msra.mxu0 %v317
        %335 = vmatprep.subr.mxu0 0.0
        %336 = vmatpush1.msra.mxu0 %v318
        %337 = vmatprep.subr.mxu0 0.0
        %338 = vmatpush1.msra.mxu0 %v319
        %339 = vmatprep.subr.mxu0 0.0
        %340 = vmatpush1.msra.mxu0 %v320
        %341 = vmatprep.subr.mxu0 0.0
        %342 = vmatpush1.msra.mxu0 %v321
        %343 = vmatprep.subr.mxu0 0.0
        %344 = vmatpush1.msra.mxu0 %v322
        %345 = vmatprep.subr.mxu0 0.0
        %346 = vmatpush1.msra.mxu0 0.0
        %347 = vmatprep.subr.mxu0 0.0
        %348 = vmatpush1.msra.mxu0 0.0
        %349 = vmatprep.subr.mxu0 0.0
        %350 = vmatpush1.msra.mxu0 0.0
        %351 = vmatprep.subr.mxu0 0.0
        %352 = vmatpush1.msra.mxu0 0.0
        %353 = vmatprep.subr.mxu0 0.0
        %354 = vmatpush1.msra.mxu0 0.0
        %355 = vmatprep.subr.mxu0 0.0
        %356 = vmatpush1.msra.mxu0 0.0
        %357 = vmatprep.subr.mxu0 0.0
        %358 = vmatpush1.msra.mxu0 0.0
        %359 = vmatprep.subr.mxu0 0.0
        %360 = vmatpush1.msra.mxu0 0.0
        %361 = vmatprep.subr.mxu0 0.0
        %362 = vmatpush1.msra.mxu0 0.0
        %363 = vmatprep.subr.mxu0 0.0
        %364 = vmatpush1.msra.mxu0 0.0
        %365 = vmatprep.subr.mxu0 0.0
        %366 = vmatpush1.msra.mxu0 0.0
        %367 = vmatprep.subr.mxu0 0.0
        %368 = vmatpush1.msra.mxu0 0.0
        %369 = vmatprep.subr.mxu0 0.0
        %370 = vmatpush1.msra.mxu0 0.0
        %371 = vmatprep.subr.mxu0 0.0
        %372 = vmatpush1.msra.mxu0 0.0
        %373 = vmatprep.subr.mxu0 0.0
        %374 = vmatpush1.msra.mxu0 0.0
        %375 = vmatprep.subr.mxu0 0.0
        %376 = vmatpush1.msra.mxu0 0.0
        %377 = vmatprep.subr.mxu0 0.0
        %378 = vmatpush1.msra.mxu0 0.0
        %379 = vmatprep.subr.mxu0 0.0
        %380 = vmatpush1.msra.mxu0 0.0
        %381 = vmatprep.subr.mxu0 0.0
        %382 = vmatpush1.msra.mxu0 0.0
        %383 = vmatprep.subr.mxu0 0.0
        %384 = vmatpush1.msra.mxu0 0.0
        %385 = vmatprep.subr.mxu0 0.0
        %386 = vmatpush1.msra.mxu0 0.0
        %387 = vmatprep.subr.mxu0 0.0
        %388 = vmatpush1.msra.mxu0 0.0
        %389 = vmatprep.subr.mxu0 0.0
        %390 = vmatpush1.msra.mxu0 0.0
        %391 = vmatprep.subr.mxu0 0.0
        %392 = vmatpush1.msra.mxu0 0.0
        %393 = vmatprep.mubr.f32.mxu0 0.0
        %394 = vmatmul.mubr.f32.gmra.mrb[0].mxu0 %v324
        %v395 = vpop.f32.mrb[0].mxu0
        %v396 = vadd.f32 0.0, %v395
        %v397 = vpop.f32.mrb[0].mxu0
        %398 = vmatprep.mubr.f32.mxu0 0.0
        %399 = vmatmul.mubr.f32.gmra.mrb[0].mxu0 %v327
        %v400 = vpop.f32.mrb[0].mxu0
        %v401 = vadd.f32 0.0, %v400
        %v402 = vpop.f32.mrb[0].mxu0
        %403 = vdwg.mxu0
        %v404 = vadd.f32 %v310, %v396
        %v405 = vadd.f32 %v311, %v401
        %v406 = vld [vmem:[#allocation2 + $0x2] sm:$0xff]
        %v407 = vld [vmem:[#allocation2 + $0xa] sm:$0xff]
        %s408 = scalar_lea.vmem [#allocation6], 128
        %v409 = vld [vmem:[%s408] sm:$0xff]
        %v410 = vld [vmem:[%s408 + $0x8] sm:$0xff]
        %v411 = vld [vmem:[%s408 + $0x10] sm:$0xff]
        %v412 = vld [vmem:[%s408 + $0x18] sm:$0xff]
        %v413 = vld [vmem:[%s408 + $0x20] sm:$0xff]
        %v414 = vld [vmem:[%s408 + $0x28] sm:$0xff]
        %v415 = vld [vmem:[%s408 + $0x30] sm:$0xff]
        %v416 = vld [vmem:[%s408 + $0x38] sm:$0xff]
        %v418 = vsel %vm209, %v406, 0
        %v421 = vsel %vm209, %v407, 0
        %423 = vmatprep.subr.mxu0 0.0
        %424 = vmatpush1.msra.mxu0 %v409
        %425 = vmatprep.subr.mxu0 0.0
        %426 = vmatpush1.msra.mxu0 %v410
        %427 = vmatprep.subr.mxu0 0.0
        %428 = vmatpush1.msra.mxu0 %v411
        %429 = vmatprep.subr.mxu0 0.0
        %430 = vmatpush1.msra.mxu0 %v412
        %431 = vmatprep.subr.mxu0 0.0
        %432 = vmatpush1.msra.mxu0 %v413
        %433 = vmatprep.subr.mxu0 0.0
        %434 = vmatpush1.msra.mxu0 %v414
        %435 = vmatprep.subr.mxu0 0.0
        %436 = vmatpush1.msra.mxu0 %v415
        %437 = vmatprep.subr.mxu0 0.0
        %438 = vmatpush1.msra.mxu0 %v416
        %439 = vmatprep.subr.mxu0 0.0
        %440 = vmatpush1.msra.mxu0 0.0
        %441 = vmatprep.subr.mxu0 0.0
        %442 = vmatpush1.msra.mxu0 0.0
        %443 = vmatprep.subr.mxu0 0.0
        %444 = vmatpush1.msra.mxu0 0.0
        %445 = vmatprep.subr.mxu0 0.0
        %446 = vmatpush1.msra.mxu0 0.0
        %447 = vmatprep.subr.mxu0 0.0
        %448 = vmatpush1.msra.mxu0 0.0
        %449 = vmatprep.subr.mxu0 0.0
        %450 = vmatpush1.msra.mxu0 0.0
        %451 = vmatprep.subr.mxu0 0.0
        %452 = vmatpush1.msra.mxu0 0.0
        %453 = vmatprep.subr.mxu0 0.0
        %454 = vmatpush1.msra.mxu0 0.0
        %455 = vmatprep.subr.mxu0 0.0
        %456 = vmatpush1.msra.mxu0 0.0
        %457 = vmatprep.subr.mxu0 0.0
        %458 = vmatpush1.msra.mxu0 0.0
        %459 = vmatprep.subr.mxu0 0.0
        %460 = vmatpush1.msra.mxu0 0.0
        %461 = vmatprep.subr.mxu0 0.0
        %462 = vmatpush1.msra.mxu0 0.0
        %463 = vmatprep.subr.mxu0 0.0
        %464 = vmatpush1.msra.mxu0 0.0
        %465 = vmatprep.subr.mxu0 0.0
        %466 = vmatpush1.msra.mxu0 0.0
        %467 = vmatprep.subr.mxu0 0.0
        %468 = vmatpush1.msra.mxu0 0.0
        %469 = vmatprep.subr.mxu0 0.0
        %470 = vmatpush1.msra.mxu0 0.0
        %471 = vmatprep.subr.mxu0 0.0
        %472 = vmatpush1.msra.mxu0 0.0
        %473 = vmatprep.subr.mxu0 0.0
        %474 = vmatpush1.msra.mxu0 0.0
        %475 = vmatprep.subr.mxu0 0.0
        %476 = vmatpush1.msra.mxu0 0.0
        %477 = vmatprep.subr.mxu0 0.0
        %478 = vmatpush1.msra.mxu0 0.0
        %479 = vmatprep.subr.mxu0 0.0
        %480 = vmatpush1.msra.mxu0 0.0
        %481 = vmatprep.subr.mxu0 0.0
        %482 = vmatpush1.msra.mxu0 0.0
        %483 = vmatprep.subr.mxu0 0.0
        %484 = vmatpush1.msra.mxu0 0.0
        %485 = vmatprep.subr.mxu0 0.0
        %486 = vmatpush1.msra.mxu0 0.0
        %487 = vmatprep.mubr.f32.mxu0 0.0
        %488 = vmatmul.mubr.f32.gmra.mrb[0].mxu0 %v418
        %v489 = vpop.f32.mrb[0].mxu0
        %v490 = vadd.f32 0.0, %v489
        %v491 = vpop.f32.mrb[0].mxu0
        %492 = vmatprep.mubr.f32.mxu0 0.0
        %493 = vmatmul.mubr.f32.gmra.mrb[0].mxu0 %v421
        %v494 = vpop.f32.mrb[0].mxu0
        %v495 = vadd.f32 0.0, %v494
        %v496 = vpop.f32.mrb[0].mxu0
        %497 = vdwg.mxu0
        %v498 = vadd.f32 %v404, %v490
        %v499 = vadd.f32 %v405, %v495
        %v500 = vmul.f32 %v498, 0.5
        %v501 = vmul.f32 %v499, 0.5
        %v502 = vtanh.pop %v500
        %v503 = vtanh.pop %v501
        %v504 = vmul.f32 %v502, 0.5
        %v505 = vmul.f32 %v503, 0.5
        %v506 = vadd.f32 %v504, 0.5
        %v507 = vadd.f32 %v505, 0.5
        %508 = vst [vmem:[%s203] sm:$0xff] %v506
        %509 = vst [vmem:[%s203 + $0x8] sm:$0xff] %v507
        %s510 = sand.u32 %s97, 1
        %s511 = scalar_lea.sflag [#allocation5], %s510
        %s512 = sand.u32 %s97, 1
        %s513 = smul.addr %s512, 16
        %s514 = scalar_lea.vmem [#allocation8], %s513
        // Predicated region
        $region41: #{tpu_custom_call.1} parent=31 // pred_check
          %p515 = pneg %p107
        $region42: #{tpu_custom_call.1} parent=31 // pred_check_branch
          %517 = sbr.rel (%p515) target = $region44
        $region43: #{tpu_custom_call.1} parent=31 // pred_region
          %s519 = ssub.s32 256, 256
          %520 = vsyncadd %s511, %s519
          %s521 = smul.addr %s21, 2
          %s522 = smul.addr %s521, 128
          %s523 = scalar_lea.hbm %s3, %s522
          %s524 = sshll.u32 %s514, 4
          %s525 = int_to_ptr.vmem [resolvable:$true] %s524
          %530 = dma.vmem_to_hbm [thread:$0]  %s525, 256, %s523, %s511, 128, 128, 8
        $region44: #{tpu_custom_call.1} parent=31 // pred_fallthru
          _
      $region32: #{tpu_custom_call.1} parent=5 // pred_fallthru
        _
      %p531 = scmp.le.s32.totalorder 2, %s16
      // Predicated region
      $region45: #{tpu_custom_call.1} parent=5 // pred_check
        %p532 = pneg %p531
      $region46: #{tpu_custom_call.1} parent=5 // pred_check_branch
        %534 = sbr.rel (%p532) target = $region48
      $region47: #{tpu_custom_call.1} parent=5 // pred_region
        %s535 = ssub.s32 %s16, 2
        // Predicated region
        $region49: #{tpu_custom_call.1} parent=47 // pred_check
          %p536 = pneg %p113
        $region50: #{tpu_custom_call.1} parent=47 // pred_check_branch
          %538 = sbr.rel (%p536) target = $region52
        $region51: #{tpu_custom_call.1} parent=47 // pred_region
          %s539 = sand.u32 %s98, 1
          %s540 = scalar_lea.sflag [#allocation5], %s539
          %s541 = sand.u32 %s98, 1
          %s542 = smul.addr %s541, 16
          %s543 = scalar_lea.vmem [#allocation8], %s542
          %544 = dma.done %s540, 256
        $region52: #{tpu_custom_call.1} parent=47 // pred_fallthru
          _
      $region48: #{tpu_custom_call.1} parent=5 // pred_fallthru
        _
    $region6: #{tpu_custom_call.1} parent=1 // loop_footer
      %s20 = sadd.s32 1, %s16
    $region7: #{tpu_custom_call.1} parent=1 // loop_footer_branch
      %15 = sbr.rel target = $region3
    $region8: #{tpu_custom_call.1} parent=1 // loop_exit
      _
    %545 = vsyncpa [#allocation4], 1
    %s546 = scalar_lea.sflag [#allocation4], 1
    %547 = vsyncpa %s546, 1
    %548 = vsyncpa [#allocation7], 1
    %549 = vsyncpa [#allocation5], 1
    %s550 = scalar_lea.sflag [#allocation5], 1
    %551 = vsyncpa %s550, 1

</llo_original>
